<compile_context>
chip_gen: v6e
topology: v6e:2x2x1
jax: 0.10.0
libtpu: 0.0.40
codegen_flags: <defaults>
</compile_context>

<pallas_src>
import jax
import jax.numpy as jnp
from jax.experimental import pallas as pl
from jax.experimental.pallas import tpu as pltpu


def _make_ce_label_smooth_kernel(num_classes: int, epsilon: float,
                                 batch_size: int, block_b: int):
    one_minus_eps = 1.0 - float(epsilon)
    eps_over_c = float(epsilon) / float(num_classes)

    def kernel(x_ref, t_ref, o_ref):
        pid = pl.program_id(0)

        x = x_ref[...].astype(jnp.float32)            # [TB, C], upcast after load
        t = t_ref[...]                                # [TB, 1] int32
        tb, c = x.shape

        # Numerically-stable log-sum-exp along the class axis.  Only the exp
        # pass needs (x - m); it fuses into the exp, so no (TB, C) `shifted`
        # temporary is materialized.
        m = jnp.max(x, axis=1, keepdims=True)                              # [TB,1]
        lse = jnp.log(jnp.sum(jnp.exp(x - m), axis=1, keepdims=True))      # [TB,1]

        # Target-class logit and full-row sum taken on raw x (one-hot never
        # materialized); shift correction applied at (TB, 1) granularity.
        # Note: out-of-range target ids contribute 0 to the target term here
        # (PyTorch's scatter_ would raise instead).
        cls_ids = jax.lax.broadcasted_iota(jnp.int32, (tb, c), 1)
        tgt_x = jnp.sum(jnp.where(cls_ids == t, x, 0.0),
                        axis=1, keepdims=True)                             # [TB,1]
        sum_x = jnp.sum(x, axis=1, keepdims=True)                          # [TB,1]
        tgt_shifted = tgt_x - m
        sum_shifted = sum_x - float(c) * m

        # Closed-form label-smoothed cross entropy per row.
        row_loss = (lse
                    - one_minus_eps * tgt_shifted
                    - eps_over_c * sum_shifted)                            # [TB,1]

        # Cheap (TB, 1) select so padded remainder rows emit exact zeros (their
        # writeback is clipped anyway; select — not multiply — is NaN/Inf safe).
        row_ids = pid * block_b + jax.lax.broadcasted_iota(jnp.int32, (tb, 1), 0)
        o_ref[...] = jnp.where(row_ids < batch_size, row_loss, 0.0)

    return kernel


def _pick_block_b(batch: int, num_classes: int, itemsize: int) -> int:
    # Derive the row count purely from a VMEM byte budget (no arbitrary cap).
    # Per tile row we budget: double-buffered input (2*itemsize per element),
    # ~3 block-sized f32 temporaries (upcast / exp / target-select), plus the
    # lane-padded, double-buffered int32 targets row (2 * 128 * 4 bytes).
    budget = 40 * 1024 * 1024          # fits under the 48 MiB scoped limit
    per_row = num_classes * (2 * itemsize + 3 * 4) + 2 * 128 * 4
    rows = budget // max(1, per_row)
    sub = 8 if itemsize >= 4 else (16 if itemsize == 2 else 32)  # sublane pack
    rows = int(max(sub, (rows // sub) * sub))
    if rows >= batch:
        return batch
    return rows


def cross_entropy_label_smooth(xs: jax.Array, targets: jax.Array,
                               num_classes: int, epsilon: float,
                               block_b: int | None = None) -> jax.Array:
    """xs: [B, C] logits (f32 or bf16, streamed as-is); targets: [B] int ids."""
    B, C = xs.shape
    assert C == num_classes
    if block_b is None:
        block_b = _pick_block_b(B, C, jnp.dtype(xs.dtype).itemsize)
    block_b = min(block_b, B)

    t2d = targets.astype(jnp.int32).reshape(B, 1)
    grid = (pl.cdiv(B, block_b),)

    kernel = _make_ce_label_smooth_kernel(num_classes, epsilon, B, block_b)

    # 48 MiB scoped VMEM: above the v5e/v6e defaults so the ~40 MiB tile budget
    # fits, and comfortably below v7x's 64 MiB physical VMEM (headroom left for
    # compiler-internal scratch).
    vmem_limit = 48 * 1024 * 1024

    row_losses = pl.pallas_call(
        kernel,
        out_shape=jax.ShapeDtypeStruct((B, 1), jnp.float32),
        grid=grid,
        in_specs=[
            pl.BlockSpec((block_b, C), lambda i: (i, 0)),   # logits tile
            pl.BlockSpec((block_b, 1), lambda i: (i, 0)),   # targets tile
        ],
        out_specs=pl.BlockSpec((block_b, 1), lambda i: (i, 0)),  # per-row losses
        compiler_params=pltpu.CompilerParams(
            # No cross-step carry -> batch axis is truly parallel (v7x megacore
            # can shard it across both TensorCores; no-op on v5e/v6e).
            dimension_semantics=("parallel",),
            vmem_limit_bytes=vmem_limit,
        ),
    )(xs, t2d)

    # Tiny (B,) reduction + the module's mean(0).sum() scaling in the wrapper.
    return jnp.sum(row_losses) * (1.0 / float(B))


if __name__ == "__main__":
    # Small synthetic problem: batch=20 (NOT a multiple of the 8-row tile, to
    # exercise the remainder-row handling), num_classes=32, epsilon=0.1.
    B, NUM_CLASSES, EPSILON = 20, 32, 0.1
    BLOCK_B = 8   # -> grid of 3 batch tiles, last one padded

    key = jax.random.PRNGKey(0)
    k_x, k_t = jax.random.split(key)
    xs = jax.random.normal(k_x, (B, NUM_CLASSES), dtype=jnp.float32)
    targets = jax.random.randint(k_t, (B,), 0, NUM_CLASSES, dtype=jnp.int32)

    # Pure-JAX reference (same math as the PyTorch module).
    log_probs = jax.nn.log_softmax(xs, axis=1)
    onehot = jax.nn.one_hot(targets, NUM_CLASSES, dtype=jnp.float32)
    smoothed = (1.0 - EPSILON) * onehot + EPSILON / NUM_CLASSES
    ref = jnp.sum(jnp.mean(-smoothed * log_probs, axis=0))

    # Explicit small tile (exercises the padded remainder tile).
    loss = cross_entropy_label_smooth(xs, targets, NUM_CLASSES, EPSILON,
                                      block_b=BLOCK_B)
    loss = jax.block_until_ready(loss)
    assert jnp.allclose(loss, ref, rtol=1e-5, atol=1e-5), (float(loss), float(ref))

    # Auto tile-size path (single full-batch tile here).
    loss_auto = cross_entropy_label_smooth(xs, targets, NUM_CLASSES, EPSILON)
    loss_auto = jax.block_until_ready(loss_auto)
    assert jnp.allclose(loss_auto, ref, rtol=1e-5, atol=1e-5), (
        float(loss_auto), float(ref))

    print("KERNEL_OK")
</pallas_src>

<mosaic_0001>
module attributes {stable_mosaic.version = 11 : i64} {
  func.func @kernel(%arg0: i32, %arg1: memref<8x32xf32, #tpu.memory_space<vmem>>, %arg2: memref<8x1xi32, #tpu.memory_space<vmem>>, %arg3: memref<8x1xf32, #tpu.memory_space<vmem>>) attributes {dimension_semantics = [#tpu.dimension_semantics<parallel>], iteration_bounds = array<i64: 3>, scalar_prefetch = 0 : i64, scratch_operands = 0 : i64, tpu.core_type = #tpu.core_type<tc>, window_params = [{transform_indices = @transform_0, window_bounds = array<i64: 8, 32>}, {transform_indices = @transform_1, window_bounds = array<i64: 8, 1>}, {transform_indices = @transform_2, window_bounds = array<i64: 8, 1>}]} {
    %c0 = arith.constant 0 : index
    %c0_0 = arith.constant 0 : index
    %0 = vector.load %arg1[%c0, %c0_0] : memref<8x32xf32, #tpu.memory_space<vmem>>, vector<8x32xf32>
    %c0_1 = arith.constant 0 : index
    %c0_2 = arith.constant 0 : index
    %1 = vector.load %arg2[%c0_1, %c0_2] : memref<8x1xi32, #tpu.memory_space<vmem>>, vector<8x1xi32>
    %cst = arith.constant dense<0xFF800000> : vector<8xf32>
    %2 = vector.multi_reduction <maximumf>, %0, %cst [1] : vector<8x32xf32> to vector<8xf32>
    %3 = vector.shape_cast %2 : vector<8xf32> to vector<8x1xf32>
    %4 = vector.broadcast %3 : vector<8x1xf32> to vector<8x32xf32>
    %5 = arith.subf %0, %4 : vector<8x32xf32>
    %6 = math.exp %5 : vector<8x32xf32>
    %cst_3 = arith.constant dense<0.000000e+00> : vector<8xf32>
    %7 = vector.multi_reduction <add>, %6, %cst_3 [1] : vector<8x32xf32> to vector<8xf32>
    %8 = vector.shape_cast %7 : vector<8xf32> to vector<8x1xf32>
    %9 = math.log %8 : vector<8x1xf32>
    %10 = tpu.iota {dimensions = array<i32: 1>} : vector<8x32xi32>
    %11 = vector.broadcast %1 : vector<8x1xi32> to vector<8x32xi32>
    %12 = arith.cmpi eq, %10, %11 : vector<8x32xi32>
    %cst_4 = arith.constant 0.000000e+00 : f32
    %13 = vector.broadcast %cst_4 : f32 to vector<8x32xf32>
    %14 = arith.select %12, %0, %13 : vector<8x32xi1>, vector<8x32xf32>
    %cst_5 = arith.constant dense<0.000000e+00> : vector<8xf32>
    %15 = vector.multi_reduction <add>, %14, %cst_5 [1] : vector<8x32xf32> to vector<8xf32>
    %16 = vector.shape_cast %15 : vector<8xf32> to vector<8x1xf32>
    %cst_6 = arith.constant dense<0.000000e+00> : vector<8xf32>
    %17 = vector.multi_reduction <add>, %0, %cst_6 [1] : vector<8x32xf32> to vector<8xf32>
    %18 = vector.shape_cast %17 : vector<8xf32> to vector<8x1xf32>
    %19 = arith.subf %16, %3 : vector<8x1xf32>
    %cst_7 = arith.constant 3.200000e+01 : f32
    %20 = vector.broadcast %cst_7 : f32 to vector<8x1xf32>
    %21 = arith.mulf %20, %3 : vector<8x1xf32>
    %22 = arith.subf %18, %21 : vector<8x1xf32>
    %cst_8 = arith.constant 0.899999976 : f32
    %23 = vector.broadcast %cst_8 : f32 to vector<8x1xf32>
    %24 = arith.mulf %23, %19 : vector<8x1xf32>
    %25 = arith.subf %9, %24 : vector<8x1xf32>
    %cst_9 = arith.constant 3.125000e-03 : f32
    %26 = vector.broadcast %cst_9 : f32 to vector<8x1xf32>
    %27 = arith.mulf %26, %22 : vector<8x1xf32>
    %28 = arith.subf %25, %27 : vector<8x1xf32>
    %c8_i32 = arith.constant 8 : i32
    %29 = arith.muli %arg0, %c8_i32 : i32
    %30 = tpu.iota {dimensions = array<i32: 0>} : vector<8x1xi32>
    %31 = vector.broadcast %29 : i32 to vector<8x1xi32>
    %32 = arith.addi %31, %30 : vector<8x1xi32>
    %c20_i32 = arith.constant 20 : i32
    %33 = vector.broadcast %c20_i32 : i32 to vector<8x1xi32>
    %34 = arith.cmpi slt, %32, %33 : vector<8x1xi32>
    %cst_10 = arith.constant 0.000000e+00 : f32
    %35 = vector.broadcast %cst_10 : f32 to vector<8x1xf32>
    %36 = arith.select %34, %28, %35 : vector<8x1xi1>, vector<8x1xf32>
    %c0_11 = arith.constant 0 : index
    %c0_12 = arith.constant 0 : index
    %37 = vector.load %arg3[%c0_11, %c0_12] : memref<8x1xf32, #tpu.memory_space<vmem>>, vector<8x1xf32>
    tpu.vector_store %arg3[%c0_11, %c0_12], %36 {strides = array<i32>} : memref<8x1xf32, #tpu.memory_space<vmem>>, vector<8x1xf32>,
    return
  }
  func.func @transform_0(%arg0: i32) -> (i32, i32) {
    %c0_i32 = arith.constant 0 : i32
    %c0_i32_0 = arith.constant 0 : i32
    return %arg0, %c0_i32 : i32, i32
  }
  func.func @transform_1(%arg0: i32) -> (i32, i32) {
    %c0_i32 = arith.constant 0 : i32
    %c0_i32_0 = arith.constant 0 : i32
    return %arg0, %c0_i32 : i32, i32
  }
  func.func @transform_2(%arg0: i32) -> (i32, i32) {
    %c0_i32 = arith.constant 0 : i32
    %c0_i32_0 = arith.constant 0 : i32
    return %arg0, %c0_i32 : i32, i32
  }
}

</mosaic_0001>

<llo_original>
// kernel: tpu_custom_call.1
$region0: #{tpu_custom_call.1}
  #allocation0 [shape = 'u32[]', space=smem, size = 0x4, offset = 0x4, fixed_abs, tag = 'smem constant byte address 0x4 - core index']
  #allocation1 [shape = 'u32[144,128]{1,0:T(1,128)}', space=vmem, size = 0x12000, scoped, tag = 'internal scratch']
  %s0 = inlined_call_operand.vmem [shape: f32[20,32], index: 0, kind: input, shape index: {}]
  %s1 = inlined_call_operand.vmem [shape: s32[20,1], index: 1, kind: input, shape index: {}]
  %s2 = inlined_call_operand.vmem [shape: f32[20,1], index: 2, kind: output, shape index: {}]
  %s3 = sld [smem:[#allocation0]]
  $region41: #{tpu_custom_call.1} parent=0
    _
  %s5 = ssub.s32 1, %s3
  %s6 = scalar_select 0, %s5, %s3
  loop: start=0, step=1, limit=5
  $region2: #{tpu_custom_call.1} parent=0 // loop_pre_header
    _
  $region3: #{tpu_custom_call.1} parent=0 // loop_header
    %s8 = sphi 0, %s12
    %p9 = scmp.ge.s32.totalorder %s8, 5
    %s18 = sphi 0, %s20
    %s21 = sphi 0, %s18
    %s22 = sphi 0, %s21
    %s38 = sphi 0, %s22
    %s44 = sphi 0, %s46
    %s47 = sphi 0, %s44
    %s48 = sphi 0, %s47
    %s64 = sphi 0, %s48
    %s70 = sphi 0, %s72
    %s73 = sphi 0, %s70
    %s74 = sphi 0, %s73
    %s90 = sphi 0, %s74
  $region4: #{tpu_custom_call.1} parent=0 // loop_header_branch
    %11 = sbr.rel (%p9) target = $region8
  $region5: #{tpu_custom_call.1} parent=0 // loop_body
    %s13 = ssub.s32 %s8, 1
    %s14 = ssub.s32 %s8, 2
    %s15 = sadd.s32 %s8, 1
    %s16 = ssub.s32 %s8, %s15
    %p17 = scmp.eq.s32.totalorder %s16, 0
    %s19 = sadd.s32 %s18, 1
    %s20 = scalar_select %p17, %s18, %s19
    %p23 = pneg %p17
    %p24 = scmp.eq.s32.totalorder %s8, 2
    %p25 = por %p23, %p24
    %p26 = scmp.ne.s32.totalorder %s18, %s21
    %p27 = scmp.eq.s32.totalorder %s8, 0
    %p28 = por %p26, %p27
    %p29 = scmp.ne.s32.totalorder %s18, %s21
    %p30 = scmp.eq.s32.totalorder %s13, 2
    %p31 = por %p29, %p30
    %p32 = scmp.ne.s32.totalorder %s21, %s22
    %p33 = scmp.eq.s32.totalorder %s13, 0
    %p34 = por %p32, %p33
    %p35 = scmp.ne.s32.totalorder %s21, %s22
    %p36 = scmp.eq.s32.totalorder %s14, 2
    %p37 = por %p35, %p36
    %p39 = scmp.ne.s32.totalorder %s22, %s38
    %p40 = scmp.eq.s32.totalorder %s14, 0
    %p41 = por %p39, %p40
    %s42 = ssub.s32 %s8, %s15
    %p43 = scmp.eq.s32.totalorder %s42, 0
    %s45 = sadd.s32 %s44, 1
    %s46 = scalar_select %p43, %s44, %s45
    %p49 = pneg %p43
    %p50 = scmp.eq.s32.totalorder %s8, 2
    %p51 = por %p49, %p50
    %p52 = scmp.ne.s32.totalorder %s44, %s47
    %p53 = scmp.eq.s32.totalorder %s8, 0
    %p54 = por %p52, %p53
    %p55 = scmp.ne.s32.totalorder %s44, %s47
    %p56 = scmp.eq.s32.totalorder %s13, 2
    %p57 = por %p55, %p56
    %p58 = scmp.ne.s32.totalorder %s47, %s48
    %p59 = scmp.eq.s32.totalorder %s13, 0
    %p60 = por %p58, %p59
    %p61 = scmp.ne.s32.totalorder %s47, %s48
    %p62 = scmp.eq.s32.totalorder %s14, 2
    %p63 = por %p61, %p62
    %p65 = scmp.ne.s32.totalorder %s48, %s64
    %p66 = scmp.eq.s32.totalorder %s14, 0
    %p67 = por %p65, %p66
    %s68 = ssub.s32 %s8, %s15
    %p69 = scmp.eq.s32.totalorder %s68, 0
    %s71 = sadd.s32 %s70, 1
    %s72 = scalar_select %p69, %s70, %s71
    %p75 = pneg %p69
    %p76 = scmp.eq.s32.totalorder %s8, 2
    %p77 = por %p75, %p76
    %p78 = scmp.ne.s32.totalorder %s70, %s73
    %p79 = scmp.eq.s32.totalorder %s8, 0
    %p80 = por %p78, %p79
    %p81 = scmp.ne.s32.totalorder %s70, %s73
    %p82 = scmp.eq.s32.totalorder %s13, 2
    %p83 = por %p81, %p82
    %p84 = scmp.ne.s32.totalorder %s73, %s74
    %p85 = scmp.eq.s32.totalorder %s13, 0
    %p86 = por %p84, %p85
    %p87 = scmp.ne.s32.totalorder %s73, %s74
    %p88 = scmp.eq.s32.totalorder %s14, 2
    %p89 = por %p87, %p88
    %p91 = scmp.ne.s32.totalorder %s74, %s90
    %p92 = scmp.eq.s32.totalorder %s14, 0
    %p93 = por %p91, %p92
    %p94 = scmp.le.s32.totalorder 1, %s8
    %p95 = scmp.lt.s32.totalorder %s8, 4
    %p96 = pnand %p94, %p95
    %p97 = pneg %p96
    // Predicated region
    $region9: #{tpu_custom_call.1} parent=5 // pred_check
      _
    $region10: #{tpu_custom_call.1} parent=5 // pred_check_branch
      %99 = sbr.rel (%p96) target = $region12
    $region11: #{tpu_custom_call.1} parent=5 // pred_region
      %s100 = ssub.s32 %s8, 1
    $region12: #{tpu_custom_call.1} parent=5 // pred_fallthru
      _
    %p101 = scmp.lt.s32.totalorder %s8, 3
    // Predicated region
    $region13: #{tpu_custom_call.1} parent=5 // pred_check
      %p102 = pneg %p101
    $region14: #{tpu_custom_call.1} parent=5 // pred_check_branch
      %104 = sbr.rel (%p102) target = $region16
    $region15: #{tpu_custom_call.1} parent=5 // pred_region
      // Predicated region
      $region17: #{tpu_custom_call.1} parent=15 // pred_check
        %p105 = pneg %p28
      $region18: #{tpu_custom_call.1} parent=15 // pred_check_branch
        %107 = sbr.rel (%p105) target = $region20
      $region19: #{tpu_custom_call.1} parent=15 // pred_region
        %p108 = scmp.lt.s32.totalorder %s8, 2
        %s109 = scalar_select %p108, %s8, 2
        %s110 = smul.addr %s109, 8
        %s111 = scalar_lea.vmem %s0, %s110
      $region20: #{tpu_custom_call.1} parent=15 // pred_fallthru
        _
      // Predicated region
      $region21: #{tpu_custom_call.1} parent=15 // pred_check
        %p112 = pneg %p54
      $region22: #{tpu_custom_call.1} parent=15 // pred_check_branch
        %114 = sbr.rel (%p112) target = $region24
      $region23: #{tpu_custom_call.1} parent=15 // pred_region
        %p115 = scmp.lt.s32.totalorder %s8, 2
        %s116 = scalar_select %p115, %s8, 2
        %s117 = smul.addr %s116, 8
        %s118 = scalar_lea.vmem %s1, %s117
      $region24: #{tpu_custom_call.1} parent=15 // pred_fallthru
        _
    $region16: #{tpu_custom_call.1} parent=5 // pred_fallthru
      _
    %p119 = scmp.le.s32.totalorder 1, %s8
    %p120 = scmp.lt.s32.totalorder %s8, 4
    %p121 = pnand %p119, %p120
    %p122 = pneg %p121
    // Predicated region
    $region25: #{tpu_custom_call.1} parent=5 // pred_check
      _
    $region26: #{tpu_custom_call.1} parent=5 // pred_check_branch
      %124 = sbr.rel (%p121) target = $region28
    $region27: #{tpu_custom_call.1} parent=5 // pred_region
      %s125 = ssub.s32 %s8, 1
      %p126 = scmp.lt.s32.totalorder %s13, 2
      %s127 = scalar_select %p126, %s13, 2
      %s128 = smul.addr %s127, 8
      %s129 = scalar_lea.vmem %s0, %s128
      %p130 = pneg %p34
      %p131 = pneg %p31
      %p132 = scmp.lt.s32.totalorder %s13, 2
      %s133 = scalar_select %p132, %s13, 2
      %s134 = smul.addr %s133, 8
      %s135 = scalar_lea.vmem %s1, %s134
      %p136 = pneg %p60
      %p137 = pneg %p57
      %p138 = pneg %p86
      %p139 = pneg %p83
      %p140 = scmp.lt.s32.totalorder %s13, 2
      %s141 = scalar_select %p140, %s13, 2
      %s142 = smul.addr %s141, 8
      %s143 = scalar_lea.vmem %s2, %s142
      %p144 = scmp.lt.s32.totalorder %s13, 2
      %s145 = scalar_select %p144, %s13, 2
      %s146 = smul.addr %s145, 8
      %s147 = scalar_lea.vmem %s0, %s146
      %p148 = scmp.lt.s32.totalorder %s13, 2
      %s149 = scalar_select %p148, %s13, 2
      %s150 = smul.addr %s149, 8
      %s151 = scalar_lea.vmem %s1, %s150
      %p152 = scmp.lt.s32.totalorder %s13, 2
      %s153 = scalar_select %p152, %s13, 2
      %s154 = smul.addr %s153, 8
      %s155 = scalar_lea.vmem %s2, %s154
      %v156 = vld [vmem:[%s147] sm:$0xff]
      %v157 = vld [vmem:[%s151] sm:$0xff]
      %vm158 = vcmask 261120
      %v159 = vsel %vm158, %v156, -inf
      %160 = vmax.xlane.f32.xlu0 %v159
      %v161 = vpop.xlane.xlu0 %160
      %v162 = vsub.f32 %v156, %v161
      %v163 = vmul.f32 %v162, 1.442695
      %v164 = vpow.pop %v163
      %v165 = vsel %vm158, %v164, 0.0
      %166 = vadd.xlane.f32.xlu0 %v165
      %v167 = vpop.xlane.xlu0 %166
      %v168 = vlog2.pop %v167
      %v169 = vmul.f32 %v168, 0.6931472
      %v170 = vlaneseq
      %v171 = vand.u32 %v170, 127
      %172 = vset.pattern.permute.xlu0 0
      %173 = vperm.xlu0 %172, %v157
      %v174 = vpop.permute.xlu0 %173
      %vm175 = vcmp.eq.s32.totalorder %v171, %v174
      %v176 = vsel %vm175, %v156, 0.0
      %v177 = vsel %vm158, %v176, 0.0
      %178 = vadd.xlane.f32.xlu0 %v177
      %v179 = vpop.xlane.xlu0 %178
      %v180 = vsel %vm158, %v156, 0.0
      %181 = vadd.xlane.f32.xlu0 %v180
      %v182 = vpop.xlane.xlu0 %181
      %v183 = vsub.f32 %v179, %v161
      %v184 = vmul.f32 %v161, 32.0
      %v185 = vsub.f32 %v182, %v184
      %v186 = vmul.f32 %v183, 0.9
      %v187 = vsub.f32 %v169, %v186
      %v188 = vmul.f32 %v185, 0.003125
      %v189 = vsub.f32 %v187, %v188
      %s190 = smul.u32 %s13, 8
      %v191 = vlaneseq
      %v192 = vshrl.u32 %v191, 7
      %v193 = vstv %s190
      %v194 = vadd.s32 %v193, %v192
      %vm195 = vcmp.lt.s32.totalorder %v194, 20
      %v196 = vsel %vm195, %v189, 0.0
      %vm197 = vcmask 7168
      %198 = vst.msk [vmem:[%s155] sm:$0xff] %vm197, %v196
      %p199 = scmp.lt.s32.totalorder %s13, 2
      %s200 = scalar_select %p199, %s13, 2
      %s201 = smul.addr %s200, 8
      %s202 = scalar_lea.vmem %s2, %s201
      // Predicated region
      $region29: #{tpu_custom_call.1} parent=27 // pred_check
        %p203 = pneg %p83
      $region30: #{tpu_custom_call.1} parent=27 // pred_check_branch
        %205 = sbr.rel (%p203) target = $region32
      $region31: #{tpu_custom_call.1} parent=27 // pred_region
        _
      $region32: #{tpu_custom_call.1} parent=27 // pred_fallthru
        _
    $region28: #{tpu_custom_call.1} parent=5 // pred_fallthru
      _
    %p206 = scmp.le.s32.totalorder 2, %s8
    // Predicated region
    $region33: #{tpu_custom_call.1} parent=5 // pred_check
      %p207 = pneg %p206
    $region34: #{tpu_custom_call.1} parent=5 // pred_check_branch
      %209 = sbr.rel (%p207) target = $region36
    $region35: #{tpu_custom_call.1} parent=5 // pred_region
      %s210 = ssub.s32 %s8, 2
      // Predicated region
      $region37: #{tpu_custom_call.1} parent=35 // pred_check
        %p211 = pneg %p89
      $region38: #{tpu_custom_call.1} parent=35 // pred_check_branch
        %213 = sbr.rel (%p211) target = $region40
      $region39: #{tpu_custom_call.1} parent=35 // pred_region
        %p214 = scmp.lt.s32.totalorder %s14, 2
        %s215 = scalar_select %p214, %s14, 2
        %s216 = smul.addr %s215, 8
        %s217 = scalar_lea.vmem %s2, %s216
      $region40: #{tpu_custom_call.1} parent=35 // pred_fallthru
        _
    $region36: #{tpu_custom_call.1} parent=5 // pred_fallthru
      _
  $region6: #{tpu_custom_call.1} parent=0 // loop_footer
    %s12 = sadd.s32 1, %s8
  $region7: #{tpu_custom_call.1} parent=0 // loop_footer_branch
    %7 = sbr.rel target = $region3
  $region8: #{tpu_custom_call.1} parent=0 // loop_exit
    _

</llo_original>
